<compile_context>
chip_gen: v7x
topology: tpu7x:2x2x1
jax: 0.10.0
libtpu: 0.0.40
codegen_flags: <defaults>
</compile_context>

<pallas_src>
import jax
import jax.numpy as jnp
from jax import lax
from jax.experimental import pallas as pl
from jax.experimental.pallas import tpu as pltpu


def _round_up(x, m):
    return ((x + m - 1) // m) * m


def _make_whole_k_kernel(use_bf16):
    def kernel(x_ref, w_ref, b_ref, o_ref):
        x = x_ref[...]
        w = w_ref[...]
        if use_bf16:
            x = x.astype(jnp.bfloat16)
            w = w.astype(jnp.bfloat16)
        acc = lax.dot_general(
            x, w, dimension_numbers=(((1,), (1,)), ((), ())),
            preferred_element_type=jnp.float32)
        o_ref[...] = (acc + b_ref[...].astype(jnp.float32)).astype(o_ref.dtype)
    return kernel


def _make_tiled_k_kernel(use_bf16, acc_in_output):
    if acc_in_output:
        # f32 output: accumulate directly into the resident output tile; bias is
        # folded into the k == 0 step. No scratch, no final copy.
        def kernel(x_ref, w_ref, b_ref, o_ref):
            k = pl.program_id(2)
            x = x_ref[...]
            w = w_ref[...]
            if use_bf16:
                x = x.astype(jnp.bfloat16)
                w = w.astype(jnp.bfloat16)
            p = lax.dot_general(
                x, w, dimension_numbers=(((1,), (1,)), ((), ())),
                preferred_element_type=jnp.float32)

            @pl.when(k == 0)
            def _():
                o_ref[...] = p + b_ref[...].astype(o_ref.dtype)

            @pl.when(k > 0)
            def _():
                o_ref[...] += p
        return kernel

    # Non-f32 output: f32 scratch accumulator, bias folded into the init.
    def kernel(x_ref, w_ref, b_ref, o_ref, acc_ref):
        k = pl.program_id(2)

        @pl.when(k == 0)
        def _():
            acc_ref[...] = jnp.broadcast_to(
                b_ref[...].astype(jnp.float32), acc_ref.shape)

        x = x_ref[...]
        w = w_ref[...]
        if use_bf16:
            x = x.astype(jnp.bfloat16)
            w = w.astype(jnp.bfloat16)
        acc_ref[...] += lax.dot_general(
            x, w, dimension_numbers=(((1,), (1,)), ((), ())),
            preferred_element_type=jnp.float32)

        @pl.when(k == pl.num_programs(2) - 1)
        def _():
            o_ref[...] = acc_ref[...].astype(o_ref.dtype)
    return kernel


def dynamic_linear(x, weight, bias, *, bm=512, bn=512, bk=512,
                   use_bf16_mxu=True,
                   vmem_limit_bytes=32 * 1024 * 1024,
                   vmem_tile_budget=24 * 1024 * 1024):
    """y = x @ weight.T + bias  (matches torch.nn.functional.linear).

    x:      [M, K]
    weight: [N, K]   (PyTorch convention: out_features x in_features)
    bias:   [N]
    returns [M, N]
    """
    M, K = x.shape
    N, K2 = weight.shape
    assert K == K2, "in_features mismatch"
    assert bias.shape == (N,), "bias shape mismatch"
    out_dtype = x.dtype
    ebytes = x.dtype.itemsize
    sub = max(8, 32 // ebytes)          # sublane multiple (8 f32, 16 bf16, ...)

    # ---- tile selection (multiples of (sub, 128), clamped to problem size) ----
    bm_ = min(bm, _round_up(M, sub))
    bn_ = min(bn, _round_up(N, 128))
    if M <= 256:
        # Small batch: x tile is resident anyway; widen bn so the grid has fewer
        # (overhead-bound) steps and output stores stay lane-dense.
        bn_ = min(max(bn_, 1024), _round_up(N, 128))

    b2 = bias.reshape(1, N)
    grid_m = pl.cdiv(M, bm_)
    grid_n = pl.cdiv(N, bn_)

    def _tile_bytes(bk_dim):
        # double-buffered x / W / out tiles + bias, in the input dtype
        # (the bf16 cast happens in-register inside the kernel).
        return (2 * bm_ * bk_dim + 2 * bn_ * bk_dim
                + 2 * bm_ * bn_ + 2 * bn_) * ebytes

    cost = pl.CostEstimate(
        flops=2 * M * N * K,
        transcendentals=0,
        bytes_accessed=(M * K + N * K + M * N + N) * ebytes)
    cparams = dict(vmem_limit_bytes=vmem_limit_bytes)

    # ---- whole-K fast path: no k axis, no scratch, no padding at all ----------
    if _tile_bytes(K) <= vmem_tile_budget:
        kernel = _make_whole_k_kernel(use_bf16_mxu)
        return pl.pallas_call(
            kernel,
            out_shape=jax.ShapeDtypeStruct((M, N), out_dtype),
            grid_spec=pltpu.PrefetchScalarGridSpec(
                num_scalar_prefetch=0,
                grid=(grid_m, grid_n),
                in_specs=[
                    pl.BlockSpec((bm_, K), lambda i, j: (i, 0)),   # x strip
                    pl.BlockSpec((bn_, K), lambda i, j: (j, 0)),   # W strip [N,K]
                    pl.BlockSpec((1, bn_), lambda i, j: (0, j)),   # bias slice
                ],
                out_specs=pl.BlockSpec((bm_, bn_), lambda i, j: (i, j)),
            ),
            compiler_params=pltpu.CompilerParams(
                dimension_semantics=("parallel", "parallel"), **cparams),
            cost_estimate=cost,
        )(x, weight, b2)

    # ---- large-K path: tile K (last grid axis, "arbitrary") -------------------
    bk_ = min(bk, _round_up(K, 128))
    Kp = _round_up(K, bk_)
    # Only K strictly needs zero padding; ragged M/N are handled by boundary
    # blocks whose out-of-range output rows/cols are masked on store.
    xp = x if Kp == K else jnp.pad(x, ((0, 0), (0, Kp - K)))
    wp = weight if Kp == K else jnp.pad(weight, ((0, 0), (0, Kp - K)))

    acc_in_output = (out_dtype == jnp.float32)
    kernel = _make_tiled_k_kernel(use_bf16_mxu, acc_in_output)
    scratch = [] if acc_in_output else [pltpu.VMEM((bm_, bn_), jnp.float32)]

    return pl.pallas_call(
        kernel,
        out_shape=jax.ShapeDtypeStruct((M, N), out_dtype),
        grid_spec=pltpu.PrefetchScalarGridSpec(
            num_scalar_prefetch=0,
            grid=(grid_m, grid_n, Kp // bk_),
            in_specs=[
                pl.BlockSpec((bm_, bk_), lambda i, j, k: (i, k)),   # x tile
                pl.BlockSpec((bn_, bk_), lambda i, j, k: (j, k)),   # W tile [N,K]
                pl.BlockSpec((1, bn_), lambda i, j, k: (0, j)),     # bias slice
            ],
            out_specs=pl.BlockSpec((bm_, bn_), lambda i, j, k: (i, j)),
            scratch_shapes=scratch,
        ),
        compiler_params=pltpu.CompilerParams(
            dimension_semantics=("parallel", "parallel", "arbitrary"), **cparams),
        cost_estimate=cost,
    )(xp, wp, b2)


if __name__ == "__main__":
    key = jax.random.PRNGKey(0)

    def make_case(k, batch, in_features, out_features):
        kx, kw, kb = jax.random.split(k, 3)
        bound = 1.0 / (in_features ** 0.5)
        weight = jax.random.uniform(kw, (out_features, in_features),
                                    minval=-bound, maxval=bound,
                                    dtype=jnp.float32)
        bias = jax.random.uniform(kb, (out_features,),
                                  minval=-bound, maxval=bound,
                                  dtype=jnp.float32)
        x = jax.random.normal(kx, (batch, in_features), dtype=jnp.float32)
        return x, weight, bias

    def ref_linear(x, w, b):
        return jnp.dot(x, w.T, precision=lax.Precision.HIGHEST) + b

    k1, k2 = jax.random.split(key)

    # 1) Small shape implied by the module: Linear(32 -> 64) on a batch of 8.
    x, w, b = make_case(k1, batch=8, in_features=32, out_features=64)
    y_ref = ref_linear(x, w, b)
    y_f32 = jax.block_until_ready(dynamic_linear(x, w, b, use_bf16_mxu=False))
    assert y_f32.shape == (8, 64)
    assert jnp.allclose(y_f32, y_ref, atol=1e-4, rtol=1e-5), "mismatch (small f32)"
    y_bf = jax.block_until_ready(dynamic_linear(x, w, b))        # bf16-MXU default
    assert jnp.allclose(y_bf, y_ref, atol=3e-2, rtol=3e-2), "mismatch (small bf16)"

    # 2) Ragged, multi-tile shape: exercises boundary blocks / no-padding path.
    x2, w2, b2 = make_case(k2, batch=500, in_features=384, out_features=200)
    y2_ref = ref_linear(x2, w2, b2)
    y2_f32 = jax.block_until_ready(dynamic_linear(x2, w2, b2, use_bf16_mxu=False))
    assert y2_f32.shape == (500, 200)
    assert jnp.allclose(y2_f32, y2_ref, atol=2e-4, rtol=1e-4), "mismatch (ragged f32)"
    y2_bf = jax.block_until_ready(dynamic_linear(x2, w2, b2))
    assert jnp.allclose(y2_bf, y2_ref, atol=5e-2, rtol=5e-2), "mismatch (ragged bf16)"

    # 3) Force the tiled-K path (large in_features regime) on a modest shape,
    #    including the K-only zero-padding branch (K=1000 -> Kp=1024).
    x3, w3, b3 = make_case(k1, batch=96, in_features=1000, out_features=256)
    y3_ref = ref_linear(x3, w3, b3)
    y3 = jax.block_until_ready(dynamic_linear(
        x3, w3, b3, use_bf16_mxu=False, bk=256, vmem_tile_budget=1 << 20))
    assert jnp.allclose(y3, y3_ref, atol=5e-4, rtol=1e-4), "mismatch (tiled-K f32)"
    y3_bf = jax.block_until_ready(dynamic_linear(
        x3, w3, b3, bk=256, vmem_tile_budget=1 << 20))
    assert jnp.allclose(y3_bf, y3_ref, atol=5e-2, rtol=5e-2), "mismatch (tiled-K bf16)"

    # 4) Non-f32 output exercises the scratch-accumulator variant.
    y4 = jax.block_until_ready(dynamic_linear(
        x3.astype(jnp.bfloat16), w3.astype(jnp.bfloat16), b3.astype(jnp.bfloat16),
        bk=256, vmem_tile_budget=1 << 20))
    assert y4.dtype == jnp.bfloat16
    assert jnp.allclose(y4.astype(jnp.float32), y3_ref, atol=8e-2, rtol=8e-2), \
        "mismatch (bf16 out)"

    print("KERNEL_OK")
</pallas_src>

<mosaic_0001>
module attributes {stable_mosaic.version = 11 : i64} {
  func.func @kernel(%arg0: i32, %arg1: i32, %arg2: memref<8x32xf32, #tpu.memory_space<vmem>>, %arg3: memref<128x32xf32, #tpu.memory_space<vmem>>, %arg4: memref<1x128xf32, #tpu.memory_space<vmem>>, %arg5: memref<8x128xf32, #tpu.memory_space<vmem>>) attributes {dimension_semantics = [#tpu.dimension_semantics<parallel>, #tpu.dimension_semantics<parallel>], iteration_bounds = array<i64: 1, 1>, scalar_prefetch = 0 : i64, scratch_operands = 0 : i64, tpu.core_type = #tpu.core_type<tc>, window_params = [{transform_indices = @transform_0, window_bounds = array<i64: 8, 32>}, {transform_indices = @transform_1, window_bounds = array<i64: 128, 32>}, {transform_indices = @transform_2, window_bounds = array<i64: 1, 128>}, {transform_indices = @transform_3, window_bounds = array<i64: 8, 128>}]} {
    %c0 = arith.constant 0 : index
    %c0_0 = arith.constant 0 : index
    %0 = vector.load %arg2[%c0, %c0_0] : memref<8x32xf32, #tpu.memory_space<vmem>>, vector<8x32xf32>
    %c0_1 = arith.constant 0 : index
    %c0_2 = arith.constant 0 : index
    %1 = vector.load %arg3[%c0_1, %c0_2] : memref<128x32xf32, #tpu.memory_space<vmem>>, vector<128x32xf32>
    %cst = arith.constant dense<0.000000e+00> : vector<8x128xf32>
    %2 = tpu.matmul %0, %1, %cst {dimension_numbers = #tpu.dot_dimension_numbers<[1], [1], [0], [0], [0, 0, 1, 0], [], []>} : vector<8x32xf32>, vector<128x32xf32>, vector<8x128xf32> -> vector<8x128xf32>
    %c0_3 = arith.constant 0 : index
    %c0_4 = arith.constant 0 : index
    %3 = vector.load %arg4[%c0_3, %c0_4] : memref<1x128xf32, #tpu.memory_space<vmem>>, vector<1x128xf32>
    %4 = vector.broadcast %3 : vector<1x128xf32> to vector<8x128xf32>
    %5 = arith.addf %2, %4 : vector<8x128xf32>
    %c0_5 = arith.constant 0 : index
    %c0_6 = arith.constant 0 : index
    %6 = vector.load %arg5[%c0_5, %c0_6] : memref<8x128xf32, #tpu.memory_space<vmem>>, vector<8x128xf32>
    tpu.vector_store %arg5[%c0_5, %c0_6], %5 {strides = array<i32>} : memref<8x128xf32, #tpu.memory_space<vmem>>, vector<8x128xf32>,
    return
  }
  func.func @transform_0(%arg0: i32, %arg1: i32) -> (i32, i32) {
    %c0_i32 = arith.constant 0 : i32
    %c0_i32_0 = arith.constant 0 : i32
    return %arg0, %c0_i32 : i32, i32
  }
  func.func @transform_1(%arg0: i32, %arg1: i32) -> (i32, i32) {
    %c0_i32 = arith.constant 0 : i32
    %c0_i32_0 = arith.constant 0 : i32
    return %arg1, %c0_i32 : i32, i32
  }
  func.func @transform_2(%arg0: i32, %arg1: i32) -> (i32, i32) {
    %c0_i32 = arith.constant 0 : i32
    %c0_i32_0 = arith.constant 0 : i32
    return %c0_i32, %arg1 : i32, i32
  }
  func.func @transform_3(%arg0: i32, %arg1: i32) -> (i32, i32) {
    %c0_i32 = arith.constant 0 : i32
    return %arg0, %arg1 : i32, i32
  }
}

</mosaic_0001>

<llo_original>
// kernel: tpu_custom_call.1
$region0: #{tpu_custom_call.1}
  #allocation0 [shape = 'u32[]', space=smem, size = 0x4, offset = 0x4, fixed_abs, tag = 'smem constant byte address 0x4 - core index']
  #allocation1 [shape = 'u32[144,128]{1,0:T(1,128)}', space=vmem, size = 0x12000, scoped, tag = 'internal scratch']
  %s0 = inlined_call_operand.vmem [shape: f32[8,32], index: 0, kind: input, shape index: {}]
  %s1 = inlined_call_operand.vmem [shape: f32[64,32], index: 1, kind: input, shape index: {}]
  %s2 = inlined_call_operand.vmem [shape: f32[1,64], index: 2, kind: input, shape index: {}]
  %s3 = inlined_call_operand.hbm [shape: f32[8,64], index: 3, kind: output, shape index: {}]
  %s4 = sld [smem:[#allocation0]]
  $region22: #{tpu_custom_call.1} parent=0
    _
  %s6 = ssub.s32 1, %s4
  %s7 = scalar_select 0, %s6, %s4
  $region1: #{tpu_custom_call.1} parent=0
    #allocation2 [shape = 'u8[4096]{0}', space=vmem, size = 0x1000, scoped, tag = 'output window, operand 0, single buffered']
    #allocation3 [shape = 's32[1]{0}', space=sflag, size = 0x4, scoped, tag = 'scoped memory for tpu_custom_call.1']
    %8 = vsyncpa [#allocation3], 0
    // Predicated region
    $region2: #{tpu_custom_call.1} parent=1 // pred_check
      _
    $region3: #{tpu_custom_call.1} parent=1 // pred_check_branch
      %10 = sbr.rel (0) target = $region5
    $region4: #{tpu_custom_call.1} parent=1 // pred_region
      _
    $region5: #{tpu_custom_call.1} parent=1 // pred_fallthru
      _
    // Predicated region
    $region6: #{tpu_custom_call.1} parent=1 // pred_check
      _
    $region7: #{tpu_custom_call.1} parent=1 // pred_check_branch
      %12 = sbr.rel (0) target = $region9
    $region8: #{tpu_custom_call.1} parent=1 // pred_region
      _
    $region9: #{tpu_custom_call.1} parent=1 // pred_fallthru
      _
    // Predicated region
    $region10: #{tpu_custom_call.1} parent=1 // pred_check
      _
    $region11: #{tpu_custom_call.1} parent=1 // pred_check_branch
      %14 = sbr.rel (0) target = $region13
    $region12: #{tpu_custom_call.1} parent=1 // pred_region
      _
    $region13: #{tpu_custom_call.1} parent=1 // pred_fallthru
      _
    %v15 = vld [vmem:[%s0] sm:$0xff]
    %v16 = vld [vmem:[%s1] sm:$0xff]
    %v17 = vld [vmem:[%s1 + $0x8] sm:$0xff]
    %v18 = vld [vmem:[%s1 + $0x10] sm:$0xff]
    %v19 = vld [vmem:[%s1 + $0x18] sm:$0xff]
    %v20 = vld [vmem:[%s1 + $0x20] sm:$0xff]
    %v21 = vld [vmem:[%s1 + $0x28] sm:$0xff]
    %v22 = vld [vmem:[%s1 + $0x30] sm:$0xff]
    %v23 = vld [vmem:[%s1 + $0x38] sm:$0xff]
    %v24 = vld [vmem:[%s1 + $0x40] sm:$0xff]
    %v25 = vld [vmem:[%s1 + $0x48] sm:$0xff]
    %v26 = vld [vmem:[%s1 + $0x50] sm:$0xff]
    %v27 = vld [vmem:[%s1 + $0x58] sm:$0xff]
    %v28 = vld [vmem:[%s1 + $0x60] sm:$0xff]
    %v29 = vld [vmem:[%s1 + $0x68] sm:$0xff]
    %v30 = vld [vmem:[%s1 + $0x70] sm:$0xff]
    %v31 = vld [vmem:[%s1 + $0x78] sm:$0xff]
    %v32 = vld [vmem:[%s2] sm:$0x1]
    %v34 = vlaneseq
    %v35 = vshrl.u32 %v34, 7
    %v36 = vsub.s32 0, %v35
    %v37 = vrot.slane %v32, %v36
    %vm39 = vcmask 261120
    %v41 = vsel %vm39, %v15, 0
    %v44 = vsel %vm39, %v16, 0
    %v47 = vsel %vm39, %v17, 0
    %v50 = vsel %vm39, %v18, 0
    %v53 = vsel %vm39, %v19, 0
    %v56 = vsel %vm39, %v20, 0
    %v59 = vsel %vm39, %v21, 0
    %v62 = vsel %vm39, %v22, 0
    %v65 = vsel %vm39, %v23, 0
    %v68 = vsel %vm39, %v24, 0
    %v71 = vsel %vm39, %v25, 0
    %v74 = vsel %vm39, %v26, 0
    %v77 = vsel %vm39, %v27, 0
    %v80 = vsel %vm39, %v28, 0
    %v83 = vsel %vm39, %v29, 0
    %v86 = vsel %vm39, %v30, 0
    %v89 = vsel %vm39, %v31, 0
    %91 = vmatprep.subr.mxu0 0.0
    %92 = vmatpush1.xpose.msra.mxu0 %v44
    %93 = vmatprep.subr.mxu0 0.0
    %94 = vmatpush1.xpose.msra.mxu0 %v47
    %95 = vmatprep.subr.mxu0 0.0
    %96 = vmatpush1.xpose.msra.mxu0 %v50
    %97 = vmatprep.subr.mxu0 0.0
    %98 = vmatpush1.xpose.msra.mxu0 %v53
    %99 = vmatprep.subr.mxu0 0.0
    %100 = vmatpush1.xpose.msra.mxu0 %v56
    %101 = vmatprep.subr.mxu0 0.0
    %102 = vmatpush1.xpose.msra.mxu0 %v59
    %103 = vmatprep.subr.mxu0 0.0
    %104 = vmatpush1.xpose.msra.mxu0 %v62
    %105 = vmatprep.subr.mxu0 0.0
    %106 = vmatpush1.xpose.msra.mxu0 %v65
    %107 = vmatprep.subr.mxu0 0.0
    %108 = vmatpush1.xpose.msra.mxu0 %v68
    %109 = vmatprep.subr.mxu0 0.0
    %110 = vmatpush1.xpose.msra.mxu0 %v71
    %111 = vmatprep.subr.mxu0 0.0
    %112 = vmatpush1.xpose.msra.mxu0 %v74
    %113 = vmatprep.subr.mxu0 0.0
    %114 = vmatpush1.xpose.msra.mxu0 %v77
    %115 = vmatprep.subr.mxu0 0.0
    %116 = vmatpush1.xpose.msra.mxu0 %v80
    %117 = vmatprep.subr.mxu0 0.0
    %118 = vmatpush1.xpose.msra.mxu0 %v83
    %119 = vmatprep.subr.mxu0 0.0
    %120 = vmatpush1.xpose.msra.mxu0 %v86
    %121 = vmatprep.subr.mxu0 0.0
    %122 = vmatpush1.xpose.msra.mxu0 %v89
    %123 = vmatprep.subr.mxu0 0.0
    %124 = vmatpush1.xpose.msra.mxu0 0.0
    %125 = vmatprep.subr.mxu0 0.0
    %126 = vmatpush1.xpose.msra.mxu0 0.0
    %127 = vmatprep.subr.mxu0 0.0
    %128 = vmatpush1.xpose.msra.mxu0 0.0
    %129 = vmatprep.subr.mxu0 0.0
    %130 = vmatpush1.xpose.msra.mxu0 0.0
    %131 = vmatprep.subr.mxu0 0.0
    %132 = vmatpush1.xpose.msra.mxu0 0.0
    %133 = vmatprep.subr.mxu0 0.0
    %134 = vmatpush1.xpose.msra.mxu0 0.0
    %135 = vmatprep.subr.mxu0 0.0
    %136 = vmatpush1.xpose.msra.mxu0 0.0
    %137 = vmatprep.subr.mxu0 0.0
    %138 = vmatpush1.xpose.msra.mxu0 0.0
    %139 = vmatprep.subr.mxu0 0.0
    %140 = vmatpush1.xpose.msra.mxu0 0.0
    %141 = vmatprep.subr.mxu0 0.0
    %142 = vmatpush1.xpose.msra.mxu0 0.0
    %143 = vmatprep.subr.mxu0 0.0
    %144 = vmatpush1.xpose.msra.mxu0 0.0
    %145 = vmatprep.subr.mxu0 0.0
    %146 = vmatpush1.xpose.msra.mxu0 0.0
    %147 = vmatprep.subr.mxu0 0.0
    %148 = vmatpush1.xpose.msra.mxu0 0.0
    %149 = vmatprep.subr.mxu0 0.0
    %150 = vmatpush1.xpose.msra.mxu0 0.0
    %151 = vmatprep.subr.mxu0 0.0
    %152 = vmatpush1.xpose.msra.mxu0 0.0
    %153 = vmatprep.subr.mxu0 0.0
    %154 = vmatpush1.xpose.msra.mxu0 0.0
    %155 = vmatprep.mubr.f32.mxu0 0.0
    %156 = vmatmul.mubr.f32.gmra.mrb[0].mxu0 %v41
    %v157 = vpop.f32.mrb[0].mxu0
    %v158 = vadd.f32 %v37, %v157
    %v159 = vpop.f32.mrb[0].mxu0
    %160 = vdwg.mxu0
    %161 = vst [vmem:[#allocation2] sm:$0xff] %v158
    // Predicated region
    $region14: #{tpu_custom_call.1} parent=1 // pred_check
      _
    $region15: #{tpu_custom_call.1} parent=1 // pred_check_branch
      %163 = sbr.rel (0) target = $region17
    $region16: #{tpu_custom_call.1} parent=1 // pred_region
      %s165 = ssub.s32 128, 128
      %166 = vsyncadd [#allocation3], %s165
      %s168 = sshll.u32 [#allocation2], 4
      %s169 = int_to_ptr.vmem [resolvable:$true] %s168
      %171 = dma.vmem_to_hbm [thread:$0]  %s169, 128, %s3, [#allocation3]
    $region17: #{tpu_custom_call.1} parent=1 // pred_fallthru
      _
    // Predicated region
    $region18: #{tpu_custom_call.1} parent=1 // pred_check
      _
    $region19: #{tpu_custom_call.1} parent=1 // pred_check_branch
      %173 = sbr.rel (0) target = $region21
    $region20: #{tpu_custom_call.1} parent=1 // pred_region
      %174 = dma.done [#allocation3], 128
    $region21: #{tpu_custom_call.1} parent=1 // pred_fallthru
      _
    %175 = vsyncpa [#allocation3], 1

</llo_original>
